<compile_context>
chip_gen: v7x
topology: tpu7x:2x2x1
jax: 0.10.0
libtpu: 0.0.40
codegen_flags: <defaults>
</compile_context>

<pallas_src>
from functools import partial

import numpy as np
import jax
import jax.numpy as jnp
from jax.experimental import pallas as pl
from jax.experimental.pallas import tpu as pltpu

_LANE = 128
# rank kernel materializes (N, N) f32/int32 slabs; cap so temporaries stay inside VMEM
_RANK_MAX_N = 1024
_RANK_VMEM_LIMIT = 48 * 1024 * 1024   # headroom for ~6 live (1024,1024) f32 slabs


# --------------------------------------------------------------------------- #
# Main kernel: rank-based exact top-K (fully vectorized, no serial selection)  #
# --------------------------------------------------------------------------- #
def _rank_topk_kernel(ego_r, nb_r, ego_c, nb_c, out_ref, *, N, K_pad):
    # Same map in two orientations (built by the wrapper — avoids an in-kernel
    # transpose/relayout): i on lanes for (1,N), i on sublanes for (N,1).
    att_r = (1.0 - ego_r[...]) * nb_r[...]          # (1, N)  att[j], j along lanes
    att_c = (1.0 - ego_c[...]) * nb_c[...]          # (N, 1)  att[i], i along sublanes

    # rank[i] = #{j : att[j] > att[i]}  +  #{j < i : att[j] == att[i]}
    # Strict total order (ties broken toward smaller index) => ranks are a
    # permutation of 0..N-1, and "top-K" == {i : rank[i] < K} exactly.
    j_ids = jax.lax.broadcasted_iota(jnp.int32, (N, N), 1)   # j along lanes
    i_ids = jax.lax.broadcasted_iota(jnp.int32, (N, N), 0)   # i along sublanes
    contrib = jnp.logical_or(
        att_r > att_c,                                        # att[j] > att[i]
        jnp.logical_and(att_r == att_c, j_ids < i_ids),       # tie, smaller j first
    ).astype(jnp.float32)                                     # (N, N)
    rank = jnp.sum(contrib, axis=1, keepdims=True).astype(jnp.int32)   # (N, 1)

    # Emit: out[0, k] = i such that rank[i] == k (k = 0 .. K_pad-1, lane-dense).
    k_ids = jax.lax.broadcasted_iota(jnp.int32, (N, K_pad), 1)
    i_col = jax.lax.broadcasted_iota(jnp.int32, (N, K_pad), 0).astype(jnp.float32)
    vals = jnp.where(rank == k_ids, i_col, 0.0)                # exactly one hit per col
    out_ref[...] = jnp.sum(vals, axis=0, keepdims=True).astype(jnp.int32)


def _rank_topk(ego_flat, nb_flat, n, K):
    k_pad = max(_LANE, ((K + _LANE - 1) // _LANE) * _LANE)     # lane-dense output
    kernel = partial(_rank_topk_kernel, N=n, K_pad=k_pad)
    out = pl.pallas_call(
        kernel,
        out_shape=jax.ShapeDtypeStruct((1, k_pad), jnp.int32),
        in_specs=[pl.BlockSpec(memory_space=pltpu.MemorySpace.VMEM)] * 4,
        out_specs=pl.BlockSpec(memory_space=pltpu.MemorySpace.VMEM),
        compiler_params=pltpu.CompilerParams(vmem_limit_bytes=_RANK_VMEM_LIMIT),
    )(ego_flat.reshape(1, n), nb_flat.reshape(1, n),
      ego_flat.reshape(n, 1), nb_flat.reshape(n, 1))
    return out[0, :K]                                          # flat indices


# --------------------------------------------------------------------------- #
# Fallback kernel for large maps: iterative selection (lane-dense, unrolled)   #
# --------------------------------------------------------------------------- #
def _iter_topk_kernel(ego_ref, nb_ref, idx_ref, *, K, N):
    R, L = ego_ref.shape                                       # (N_pad/128, 128)
    att = (1.0 - ego_ref[...]) * nb_ref[...]
    ids = (jax.lax.broadcasted_iota(jnp.int32, (R, L), 0) * L
           + jax.lax.broadcasted_iota(jnp.int32, (R, L), 1))
    att = jnp.where(ids < N, att, -jnp.inf)                    # mask padding once
    big = jnp.int32(R * L)

    # NOTE: argmax_p has no Mosaic lowering, so max + first-match-min is used;
    # the mask reuses `cand` so exactly one element is removed per step.
    def body(k, x):
        m = jnp.max(x)
        cand = jnp.where(x == m, ids, big)
        idx = jnp.min(cand)                                    # smallest tied index
        idx_ref[k] = idx                                       # flat index only
        return jnp.where(cand == idx, -jnp.inf, x)

    jax.lax.fori_loop(0, K, body, att, unroll=8)               # cross-iter visibility


def _iter_topk(ego_flat, nb_flat, n, K):
    n_pad = ((n + _LANE - 1) // _LANE) * _LANE
    pad = n_pad - n
    ego_p = jnp.pad(ego_flat, (0, pad)).reshape(n_pad // _LANE, _LANE)
    nb_p = jnp.pad(nb_flat, (0, pad)).reshape(n_pad // _LANE, _LANE)
    kernel = partial(_iter_topk_kernel, K=K, N=n)
    return pl.pallas_call(
        kernel,
        out_shape=jax.ShapeDtypeStruct((K,), jnp.int32),
        in_specs=[pl.BlockSpec(memory_space=pltpu.MemorySpace.VMEM)] * 2,
        out_specs=pl.BlockSpec(memory_space=pltpu.MemorySpace.SMEM),
    )(ego_p, nb_p)


# --------------------------------------------------------------------------- #
# Wrapper (module forward)                                                     #
# --------------------------------------------------------------------------- #
def attention_collaboration_forward(ego_conf, nb_conf, delta=0.25):
    w, h = int(ego_conf.shape[-2]), int(ego_conf.shape[-1])
    n = w * h
    K = min(int(h * w * delta), n)
    if K <= 0:                                                 # guard tiny maps/delta
        z = jnp.zeros((0,), jnp.int32)
        return z, z
    ego = ego_conf.astype(jnp.float32).reshape(n)
    nb = nb_conf.astype(jnp.float32).reshape(n)
    if n <= _RANK_MAX_N:
        flat = _rank_topk(ego, nb, n, K)
    else:
        flat = _iter_topk(ego, nb, n, K)
    # rows/cols split done vectorized OUTSIDE the kernel (off the critical path).
    rows = (flat // h).astype(jnp.int32)
    cols = (flat % h).astype(jnp.int32)
    return rows, cols  # int32 (torch returns int64; values identical)
    # NOTE: if many (ego, nb) pairs were processed, a leading batch grid axis
    # marked "parallel" would shard pairs across TensorCores (v7x has 2 per chip).


def init_unused_params(dim=64, key=jax.random.PRNGKey(42)):
    # Parameters created in __init__ (ConvMod + conv_mask_uniform) are NOT used by
    # attention_collaboration.forward; initialized deterministically for completeness.
    ks = jax.random.split(key, 8)
    sq = np.array([[(i - 3) ** 2 + (j - 3) ** 2 for j in range(7)] for i in range(7)], np.float32)
    sq[3, 3] = 1e5
    return {
        "convatt.norm_a.w": jnp.ones((2 * dim,)), "convatt.norm_a.b": jnp.zeros((2 * dim,)),
        "convatt.norm_v.w": jnp.ones((dim,)), "convatt.norm_v.b": jnp.zeros((dim,)),
        "convatt.a0.w": jax.random.normal(ks[0], (dim, 2 * dim, 1, 1)) * 0.02,
        "convatt.a0.b": jnp.zeros((dim,)),
        "convatt.a2.w": jax.random.normal(ks[1], (dim, 1, 11, 11)) * 0.02,
        "convatt.a2.b": jnp.zeros((dim,)),
        "convatt.v.w": jax.random.normal(ks[2], (dim, dim, 1, 1)) * 0.02,
        "convatt.v.b": jnp.zeros((dim,)),
        "convatt.proj.w": jax.random.normal(ks[3], (dim, dim, 1, 1)) * 0.02,
        "convatt.proj.b": jnp.zeros((dim,)),
        "masker.w": jax.random.normal(ks[4], (64, 64, 3, 3)) * 0.02,
        "masker.b": jnp.zeros((64,)),
        "masker.Lambda": jnp.float32(3.0),
        "masker.square_dis": jnp.asarray(sq),
    }


if __name__ == "__main__":
    _ = init_unused_params()  # deterministic, unused by forward

    key = jax.random.PRNGKey(0)
    k1, k2 = jax.random.split(key)
    W, H = 16, 16
    ego_conf = jax.random.uniform(k1, (W, H), dtype=jnp.float32)
    nb_conf = jax.random.uniform(k2, (W, H), dtype=jnp.float32)

    rows, cols = attention_collaboration_forward(ego_conf, nb_conf, delta=0.25)
    rows = jax.block_until_ready(rows)
    cols = jax.block_until_ready(cols)

    # reference check (set equality; torch.topk(sorted=False) order is unspecified)
    att = (1.0 - ego_conf) * nb_conf
    K = int(W * H * 0.25)
    ref_idx = set(np.asarray(jax.lax.top_k(att.reshape(-1), K)[1]).tolist())

    got = set((np.asarray(rows) * H + np.asarray(cols)).tolist())
    assert rows.shape == (K,) and cols.shape == (K,)
    assert got == ref_idx, f"rank-path top-K mismatch: {sorted(got ^ ref_idx)}"

    # also exercise the large-map fallback kernel on the same data
    flat_iter = jax.block_until_ready(
        _iter_topk(ego_conf.reshape(-1), nb_conf.reshape(-1), W * H, K))
    got_iter = set(np.asarray(flat_iter).tolist())
    assert got_iter == ref_idx, f"iter-path top-K mismatch: {sorted(got_iter ^ ref_idx)}"

    print("KERNEL_OK")
</pallas_src>

<mosaic_0001>
module attributes {stable_mosaic.version = 11 : i64} {
  func.func @_rank_topk_kernel(%arg0: memref<1x256xf32, #tpu.memory_space<vmem>>, %arg1: memref<1x256xf32, #tpu.memory_space<vmem>>, %arg2: memref<256x1xf32, #tpu.memory_space<vmem>>, %arg3: memref<256x1xf32, #tpu.memory_space<vmem>>, %arg4: memref<1x128xi32, #tpu.memory_space<vmem>>) attributes {dimension_semantics = [], scalar_prefetch = 0 : i64, scratch_operands = 0 : i64, tpu.core_type = #tpu.core_type<tc>} {
    %c0 = arith.constant 0 : index
    %c0_0 = arith.constant 0 : index
    %0 = vector.load %arg0[%c0, %c0_0] : memref<1x256xf32, #tpu.memory_space<vmem>>, vector<1x256xf32>
    %cst = arith.constant 1.000000e+00 : f32
    %1 = vector.broadcast %cst : f32 to vector<1x256xf32>
    %2 = arith.subf %1, %0 : vector<1x256xf32>
    %c0_1 = arith.constant 0 : index
    %c0_2 = arith.constant 0 : index
    %3 = vector.load %arg1[%c0_1, %c0_2] : memref<1x256xf32, #tpu.memory_space<vmem>>, vector<1x256xf32>
    %4 = arith.mulf %2, %3 : vector<1x256xf32>
    %c0_3 = arith.constant 0 : index
    %c0_4 = arith.constant 0 : index
    %5 = vector.load %arg2[%c0_3, %c0_4] : memref<256x1xf32, #tpu.memory_space<vmem>>, vector<256x1xf32>
    %cst_5 = arith.constant 1.000000e+00 : f32
    %6 = vector.broadcast %cst_5 : f32 to vector<256x1xf32>
    %7 = arith.subf %6, %5 : vector<256x1xf32>
    %c0_6 = arith.constant 0 : index
    %c0_7 = arith.constant 0 : index
    %8 = vector.load %arg3[%c0_6, %c0_7] : memref<256x1xf32, #tpu.memory_space<vmem>>, vector<256x1xf32>
    %9 = arith.mulf %7, %8 : vector<256x1xf32>
    %10 = tpu.iota {dimensions = array<i32: 1>} : vector<256x256xi32>
    %11 = tpu.iota {dimensions = array<i32: 0>} : vector<256x256xi32>
    %12 = vector.broadcast %4 : vector<1x256xf32> to vector<256x256xf32>
    %13 = vector.broadcast %9 : vector<256x1xf32> to vector<256x256xf32>
    %14 = arith.cmpf ogt, %12, %13 : vector<256x256xf32>
    %15 = vector.broadcast %4 : vector<1x256xf32> to vector<256x256xf32>
    %16 = vector.broadcast %9 : vector<256x1xf32> to vector<256x256xf32>
    %17 = arith.cmpf oeq, %15, %16 : vector<256x256xf32>
    %18 = arith.cmpi slt, %10, %11 : vector<256x256xi32>
    %19 = arith.andi %17, %18 : vector<256x256xi1>
    %20 = arith.ori %14, %19 : vector<256x256xi1>
    %21 = arith.extui %20 : vector<256x256xi1> to vector<256x256xi32>
    %22 = arith.sitofp %21 : vector<256x256xi32> to vector<256x256xf32>
    %cst_8 = arith.constant dense<0.000000e+00> : vector<256xf32>
    %23 = vector.multi_reduction <add>, %22, %cst_8 [1] : vector<256x256xf32> to vector<256xf32>
    %24 = vector.shape_cast %23 : vector<256xf32> to vector<256x1xf32>
    %25 = arith.fptosi %24 : vector<256x1xf32> to vector<256x1xi32>
    %26 = tpu.iota {dimensions = array<i32: 1>} : vector<256x128xi32>
    %27 = tpu.iota {dimensions = array<i32: 0>} : vector<256x128xi32>
    %28 = arith.sitofp %27 : vector<256x128xi32> to vector<256x128xf32>
    %29 = vector.broadcast %25 : vector<256x1xi32> to vector<256x128xi32>
    %30 = arith.cmpi eq, %29, %26 : vector<256x128xi32>
    %cst_9 = arith.constant 0.000000e+00 : f32
    %31 = vector.broadcast %cst_9 : f32 to vector<256x128xf32>
    %32 = arith.select %30, %28, %31 : vector<256x128xi1>, vector<256x128xf32>
    %cst_10 = arith.constant dense<0.000000e+00> : vector<128xf32>
    %33 = vector.multi_reduction <add>, %32, %cst_10 [0] : vector<256x128xf32> to vector<128xf32>
    %34 = vector.shape_cast %33 : vector<128xf32> to vector<1x128xf32>
    %35 = arith.fptosi %34 : vector<1x128xf32> to vector<1x128xi32>
    %c0_11 = arith.constant 0 : index
    %c0_12 = arith.constant 0 : index
    %36 = vector.load %arg4[%c0_11, %c0_12] : memref<1x128xi32, #tpu.memory_space<vmem>>, vector<1x128xi32>
    tpu.vector_store %arg4[%c0_11, %c0_12], %35 {strides = array<i32>} : memref<1x128xi32, #tpu.memory_space<vmem>>, vector<1x128xi32>,
    return
  }
}

</mosaic_0001>

<llo_original>
// kernel: tpu_custom_call.1
$region0: #{tpu_custom_call.1}
  #allocation0 [shape = 'u32[]', space=smem, size = 0x4, offset = 0x4, fixed_abs, tag = 'smem constant byte address 0x4 - core index']
  #allocation1 [shape = 'u32[144,128]{1,0:T(1,128)}', space=vmem, size = 0x12000, scoped, tag = 'internal scratch']
  %s0 = inlined_call_operand.vmem [shape: f32[1,256], index: 0, kind: input, shape index: {}]
  %s1 = inlined_call_operand.vmem [shape: f32[1,256], index: 1, kind: input, shape index: {}]
  %s2 = inlined_call_operand.vmem [shape: f32[256,1], index: 2, kind: input, shape index: {}]
  %s3 = inlined_call_operand.vmem [shape: f32[256,1], index: 3, kind: input, shape index: {}]
  %s4 = inlined_call_operand.hbm [shape: s32[1,128], index: 4, kind: output, shape index: {}]
  %s5 = sld [smem:[#allocation0]]
  $region26: #{tpu_custom_call.1} parent=0
    _
  %s7 = ssub.s32 1, %s5
  %s8 = scalar_select 0, %s7, %s5
  $region1: #{tpu_custom_call.1} parent=0
    #allocation2 [shape = 'u8[512]{0}', space=vmem, size = 0x400, scoped, tag = 'output window, operand 0, single buffered']
    #allocation3 [shape = 's32[1]{0}', space=sflag, size = 0x4, scoped, tag = 'scoped memory for tpu_custom_call.1']
    %9 = vsyncpa [#allocation3], 0
    // Predicated region
    $region2: #{tpu_custom_call.1} parent=1 // pred_check
      _
    $region3: #{tpu_custom_call.1} parent=1 // pred_check_branch
      %11 = sbr.rel (0) target = $region5
    $region4: #{tpu_custom_call.1} parent=1 // pred_region
      _
    $region5: #{tpu_custom_call.1} parent=1 // pred_fallthru
      _
    // Predicated region
    $region6: #{tpu_custom_call.1} parent=1 // pred_check
      _
    $region7: #{tpu_custom_call.1} parent=1 // pred_check_branch
      %13 = sbr.rel (0) target = $region9
    $region8: #{tpu_custom_call.1} parent=1 // pred_region
      _
    $region9: #{tpu_custom_call.1} parent=1 // pred_fallthru
      _
    // Predicated region
    $region10: #{tpu_custom_call.1} parent=1 // pred_check
      _
    $region11: #{tpu_custom_call.1} parent=1 // pred_check_branch
      %15 = sbr.rel (0) target = $region13
    $region12: #{tpu_custom_call.1} parent=1 // pred_region
      _
    $region13: #{tpu_custom_call.1} parent=1 // pred_fallthru
      _
    // Predicated region
    $region14: #{tpu_custom_call.1} parent=1 // pred_check
      _
    $region15: #{tpu_custom_call.1} parent=1 // pred_check_branch
      %17 = sbr.rel (0) target = $region17
    $region16: #{tpu_custom_call.1} parent=1 // pred_region
      _
    $region17: #{tpu_custom_call.1} parent=1 // pred_fallthru
      _
    %v18 = vld [vmem:[%s0] sm:$0x3]
    %v19 = vsub.f32 1.0, %v18
    %v20 = vld [vmem:[%s1] sm:$0x3]
    %v21 = vmul.f32 %v19, %v20
    %v22 = vld [vmem:[%s2] sm:$0xff]
    %v23 = vld [vmem:[%s2 + $0x8] sm:$0xff]
    %v24 = vld [vmem:[%s2 + $0x10] sm:$0xff]
    %v25 = vld [vmem:[%s2 + $0x18] sm:$0xff]
    %v26 = vld [vmem:[%s2 + $0x20] sm:$0xff]
    %v27 = vld [vmem:[%s2 + $0x28] sm:$0xff]
    %v28 = vld [vmem:[%s2 + $0x30] sm:$0xff]
    %v29 = vld [vmem:[%s2 + $0x38] sm:$0xff]
    %v30 = vld [vmem:[%s2 + $0x40] sm:$0xff]
    %v31 = vld [vmem:[%s2 + $0x48] sm:$0xff]
    %v32 = vld [vmem:[%s2 + $0x50] sm:$0xff]
    %v33 = vld [vmem:[%s2 + $0x58] sm:$0xff]
    %v34 = vld [vmem:[%s2 + $0x60] sm:$0xff]
    %v35 = vld [vmem:[%s2 + $0x68] sm:$0xff]
    %v36 = vld [vmem:[%s2 + $0x70] sm:$0xff]
    %v37 = vld [vmem:[%s2 + $0x78] sm:$0xff]
    %v38 = vld [vmem:[%s2 + $0x80] sm:$0xff]
    %v39 = vld [vmem:[%s2 + $0x88] sm:$0xff]
    %v40 = vld [vmem:[%s2 + $0x90] sm:$0xff]
    %v41 = vld [vmem:[%s2 + $0x98] sm:$0xff]
    %v42 = vld [vmem:[%s2 + $0xa0] sm:$0xff]
    %v43 = vld [vmem:[%s2 + $0xa8] sm:$0xff]
    %v44 = vld [vmem:[%s2 + $0xb0] sm:$0xff]
    %v45 = vld [vmem:[%s2 + $0xb8] sm:$0xff]
    %v46 = vld [vmem:[%s2 + $0xc0] sm:$0xff]
    %v47 = vld [vmem:[%s2 + $0xc8] sm:$0xff]
    %v48 = vld [vmem:[%s2 + $0xd0] sm:$0xff]
    %v49 = vld [vmem:[%s2 + $0xd8] sm:$0xff]
    %v50 = vld [vmem:[%s2 + $0xe0] sm:$0xff]
    %v51 = vld [vmem:[%s2 + $0xe8] sm:$0xff]
    %v52 = vld [vmem:[%s2 + $0xf0] sm:$0xff]
    %v53 = vld [vmem:[%s2 + $0xf8] sm:$0xff]
    %v54 = vsub.f32 1.0, %v22
    %v55 = vsub.f32 1.0, %v23
    %v56 = vsub.f32 1.0, %v24
    %v57 = vsub.f32 1.0, %v25
    %v58 = vsub.f32 1.0, %v26
    %v59 = vsub.f32 1.0, %v27
    %v60 = vsub.f32 1.0, %v28
    %v61 = vsub.f32 1.0, %v29
    %v62 = vsub.f32 1.0, %v30
    %v63 = vsub.f32 1.0, %v31
    %v64 = vsub.f32 1.0, %v32
    %v65 = vsub.f32 1.0, %v33
    %v66 = vsub.f32 1.0, %v34
    %v67 = vsub.f32 1.0, %v35
    %v68 = vsub.f32 1.0, %v36
    %v69 = vsub.f32 1.0, %v37
    %v70 = vsub.f32 1.0, %v38
    %v71 = vsub.f32 1.0, %v39
    %v72 = vsub.f32 1.0, %v40
    %v73 = vsub.f32 1.0, %v41
    %v74 = vsub.f32 1.0, %v42
    %v75 = vsub.f32 1.0, %v43
    %v76 = vsub.f32 1.0, %v44
    %v77 = vsub.f32 1.0, %v45
    %v78 = vsub.f32 1.0, %v46
    %v79 = vsub.f32 1.0, %v47
    %v80 = vsub.f32 1.0, %v48
    %v81 = vsub.f32 1.0, %v49
    %v82 = vsub.f32 1.0, %v50
    %v83 = vsub.f32 1.0, %v51
    %v84 = vsub.f32 1.0, %v52
    %v85 = vsub.f32 1.0, %v53
    %v86 = vld [vmem:[%s3] sm:$0xff]
    %v87 = vld [vmem:[%s3 + $0x8] sm:$0xff]
    %v88 = vld [vmem:[%s3 + $0x10] sm:$0xff]
    %v89 = vld [vmem:[%s3 + $0x18] sm:$0xff]
    %v90 = vld [vmem:[%s3 + $0x20] sm:$0xff]
    %v91 = vld [vmem:[%s3 + $0x28] sm:$0xff]
    %v92 = vld [vmem:[%s3 + $0x30] sm:$0xff]
    %v93 = vld [vmem:[%s3 + $0x38] sm:$0xff]
    %v94 = vld [vmem:[%s3 + $0x40] sm:$0xff]
    %v95 = vld [vmem:[%s3 + $0x48] sm:$0xff]
    %v96 = vld [vmem:[%s3 + $0x50] sm:$0xff]
    %v97 = vld [vmem:[%s3 + $0x58] sm:$0xff]
    %v98 = vld [vmem:[%s3 + $0x60] sm:$0xff]
    %v99 = vld [vmem:[%s3 + $0x68] sm:$0xff]
    %v100 = vld [vmem:[%s3 + $0x70] sm:$0xff]
    %v101 = vld [vmem:[%s3 + $0x78] sm:$0xff]
    %v102 = vld [vmem:[%s3 + $0x80] sm:$0xff]
    %v103 = vld [vmem:[%s3 + $0x88] sm:$0xff]
    %v104 = vld [vmem:[%s3 + $0x90] sm:$0xff]
    %v105 = vld [vmem:[%s3 + $0x98] sm:$0xff]
    %v106 = vld [vmem:[%s3 + $0xa0] sm:$0xff]
    %v107 = vld [vmem:[%s3 + $0xa8] sm:$0xff]
    %v108 = vld [vmem:[%s3 + $0xb0] sm:$0xff]
    %v109 = vld [vmem:[%s3 + $0xb8] sm:$0xff]
    %v110 = vld [vmem:[%s3 + $0xc0] sm:$0xff]
    %v111 = vld [vmem:[%s3 + $0xc8] sm:$0xff]
    %v112 = vld [vmem:[%s3 + $0xd0] sm:$0xff]
    %v113 = vld [vmem:[%s3 + $0xd8] sm:$0xff]
    %v114 = vld [vmem:[%s3 + $0xe0] sm:$0xff]
    %v115 = vld [vmem:[%s3 + $0xe8] sm:$0xff]
    %v116 = vld [vmem:[%s3 + $0xf0] sm:$0xff]
    %v117 = vld [vmem:[%s3 + $0xf8] sm:$0xff]
    %v118 = vmul.f32 %v54, %v86
    %v119 = vmul.f32 %v55, %v87
    %v120 = vmul.f32 %v56, %v88
    %v121 = vmul.f32 %v57, %v89
    %v122 = vmul.f32 %v58, %v90
    %v123 = vmul.f32 %v59, %v91
    %v124 = vmul.f32 %v60, %v92
    %v125 = vmul.f32 %v61, %v93
    %v126 = vmul.f32 %v62, %v94
    %v127 = vmul.f32 %v63, %v95
    %v128 = vmul.f32 %v64, %v96
    %v129 = vmul.f32 %v65, %v97
    %v130 = vmul.f32 %v66, %v98
    %v131 = vmul.f32 %v67, %v99
    %v132 = vmul.f32 %v68, %v100
    %v133 = vmul.f32 %v69, %v101
    %v134 = vmul.f32 %v70, %v102
    %v135 = vmul.f32 %v71, %v103
    %v136 = vmul.f32 %v72, %v104
    %v137 = vmul.f32 %v73, %v105
    %v138 = vmul.f32 %v74, %v106
    %v139 = vmul.f32 %v75, %v107
    %v140 = vmul.f32 %v76, %v108
    %v141 = vmul.f32 %v77, %v109
    %v142 = vmul.f32 %v78, %v110
    %v143 = vmul.f32 %v79, %v111
    %v144 = vmul.f32 %v80, %v112
    %v145 = vmul.f32 %v81, %v113
    %v146 = vmul.f32 %v82, %v114
    %v147 = vmul.f32 %v83, %v115
    %v148 = vmul.f32 %v84, %v116
    %v149 = vmul.f32 %v85, %v117
    %v150 = vlaneseq
    %v151 = vand.u32 %v150, 127
    %v152 = vadd.s32 %v151, 128
    %v153 = vlaneseq
    %v154 = vshrl.u32 %v153, 7
    %v155 = vadd.s32 %v154, 8
    %v156 = vadd.s32 %v154, 16
    %v157 = vadd.s32 %v154, 24
    %v158 = vadd.s32 %v154, 32
    %v159 = vadd.s32 %v154, 40
    %v160 = vadd.s32 %v154, 48
    %v161 = vadd.s32 %v154, 56
    %v162 = vadd.s32 %v154, 64
    %v163 = vadd.s32 %v154, 72
    %v164 = vadd.s32 %v154, 80
    %v165 = vadd.s32 %v154, 88
    %v166 = vadd.s32 %v154, 96
    %v167 = vadd.s32 %v154, 104
    %v168 = vadd.s32 %v154, 112
    %v169 = vadd.s32 %v154, 120
    %v170 = vadd.s32 %v154, 128
    %v171 = vadd.s32 %v154, 136
    %v172 = vadd.s32 %v154, 144
    %v173 = vadd.s32 %v154, 152
    %v174 = vadd.s32 %v154, 160
    %v175 = vadd.s32 %v154, 168
    %v176 = vadd.s32 %v154, 176
    %v177 = vadd.s32 %v154, 184
    %v178 = vadd.s32 %v154, 192
    %v179 = vadd.s32 %v154, 200
    %v180 = vadd.s32 %v154, 208
    %v181 = vadd.s32 %v154, 216
    %v182 = vadd.s32 %v154, 224
    %v183 = vadd.s32 %v154, 232
    %v184 = vadd.s32 %v154, 240
    %v185 = vadd.s32 %v154, 248
    %v187 = vlaneseq
    %v188 = vshrl.u32 %v187, 7
    %v189 = vsub.s32 0, %v188
    %v190 = vrot.slane %v21, %v189
    %v191 = vlaneseq
    %v192 = vshrl.u32 %v191, 7
    %v193 = vsub.s32 1, %v192
    %v194 = vrot.slane %v21, %v193
    %198 = vset.pattern.permute.xlu0 0
    %199 = vperm.xlu0 %198, %v118
    %v200 = vpop.permute.xlu0 %199
    %203 = vset.pattern.permute.xlu0 0
    %204 = vperm.xlu0 %203, %v119
    %v205 = vpop.permute.xlu0 %204
    %208 = vset.pattern.permute.xlu0 0
    %209 = vperm.xlu0 %208, %v120
    %v210 = vpop.permute.xlu0 %209
    %213 = vset.pattern.permute.xlu0 0
    %214 = vperm.xlu0 %213, %v121
    %v215 = vpop.permute.xlu0 %214
    %218 = vset.pattern.permute.xlu0 0
    %219 = vperm.xlu0 %218, %v122
    %v220 = vpop.permute.xlu0 %219
    %223 = vset.pattern.permute.xlu0 0
    %224 = vperm.xlu0 %223, %v123
    %v225 = vpop.permute.xlu0 %224
    %228 = vset.pattern.permute.xlu0 0
    %229 = vperm.xlu0 %228, %v124
    %v230 = vpop.permute.xlu0 %229
    %233 = vset.pattern.permute.xlu0 0
    %234 = vperm.xlu0 %233, %v125
    %v235 = vpop.permute.xlu0 %234
    %238 = vset.pattern.permute.xlu0 0
    %239 = vperm.xlu0 %238, %v126
    %v240 = vpop.permute.xlu0 %239
    %243 = vset.pattern.permute.xlu0 0
    %244 = vperm.xlu0 %243, %v127
    %v245 = vpop.permute.xlu0 %244
    %248 = vset.pattern.permute.xlu0 0
    %249 = vperm.xlu0 %248, %v128
    %v250 = vpop.permute.xlu0 %249
    %253 = vset.pattern.permute.xlu0 0
    %254 = vperm.xlu0 %253, %v129
    %v255 = vpop.permute.xlu0 %254
    %258 = vset.pattern.permute.xlu0 0
    %259 = vperm.xlu0 %258, %v130
    %v260 = vpop.permute.xlu0 %259
    %263 = vset.pattern.permute.xlu0 0
    %264 = vperm.xlu0 %263, %v131
    %v265 = vpop.permute.xlu0 %264
    %268 = vset.pattern.permute.xlu0 0
    %269 = vperm.xlu0 %268, %v132
    %v270 = vpop.permute.xlu0 %269
    %273 = vset.pattern.permute.xlu0 0
    %274 = vperm.xlu0 %273, %v133
    %v275 = vpop.permute.xlu0 %274
    %278 = vset.pattern.permute.xlu0 0
    %279 = vperm.xlu0 %278, %v134
    %v280 = vpop.permute.xlu0 %279
    %283 = vset.pattern.permute.xlu0 0
    %284 = vperm.xlu0 %283, %v135
    %v285 = vpop.permute.xlu0 %284
    %288 = vset.pattern.permute.xlu0 0
    %289 = vperm.xlu0 %288, %v136
    %v290 = vpop.permute.xlu0 %289
    %293 = vset.pattern.permute.xlu0 0
    %294 = vperm.xlu0 %293, %v137
    %v295 = vpop.permute.xlu0 %294
    %298 = vset.pattern.permute.xlu0 0
    %299 = vperm.xlu0 %298, %v138
    %v300 = vpop.permute.xlu0 %299
    %303 = vset.pattern.permute.xlu0 0
    %304 = vperm.xlu0 %303, %v139
    %v305 = vpop.permute.xlu0 %304
    %308 = vset.pattern.permute.xlu0 0
    %309 = vperm.xlu0 %308, %v140
    %v310 = vpop.permute.xlu0 %309
    %313 = vset.pattern.permute.xlu0 0
    %314 = vperm.xlu0 %313, %v141
    %v315 = vpop.permute.xlu0 %314
    %318 = vset.pattern.permute.xlu0 0
    %319 = vperm.xlu0 %318, %v142
    %v320 = vpop.permute.xlu0 %319
    %323 = vset.pattern.permute.xlu0 0
    %324 = vperm.xlu0 %323, %v143
    %v325 = vpop.permute.xlu0 %324
    %328 = vset.pattern.permute.xlu0 0
    %329 = vperm.xlu0 %328, %v144
    %v330 = vpop.permute.xlu0 %329
    %333 = vset.pattern.permute.xlu0 0
    %334 = vperm.xlu0 %333, %v145
    %v335 = vpop.permute.xlu0 %334
    %338 = vset.pattern.permute.xlu0 0
    %339 = vperm.xlu0 %338, %v146
    %v340 = vpop.permute.xlu0 %339
    %343 = vset.pattern.permute.xlu0 0
    %344 = vperm.xlu0 %343, %v147
    %v345 = vpop.permute.xlu0 %344
    %348 = vset.pattern.permute.xlu0 0
    %349 = vperm.xlu0 %348, %v148
    %v350 = vpop.permute.xlu0 %349
    %353 = vset.pattern.permute.xlu0 0
    %354 = vperm.xlu0 %353, %v149
    %v355 = vpop.permute.xlu0 %354
    %vm357 = vcmp.gt.f32.partialorder %v190, %v200
    %vm358 = vcmp.gt.f32.partialorder %v194, %v200
    %vm359 = vcmp.gt.f32.partialorder %v190, %v205
    %vm360 = vcmp.gt.f32.partialorder %v194, %v205
    %vm361 = vcmp.gt.f32.partialorder %v190, %v210
    %vm362 = vcmp.gt.f32.partialorder %v194, %v210
    %vm363 = vcmp.gt.f32.partialorder %v190, %v215
    %vm364 = vcmp.gt.f32.partialorder %v194, %v215
    %vm365 = vcmp.gt.f32.partialorder %v190, %v220
    %vm366 = vcmp.gt.f32.partialorder %v194, %v220
    %vm367 = vcmp.gt.f32.partialorder %v190, %v225
    %vm368 = vcmp.gt.f32.partialorder %v194, %v225
    %vm369 = vcmp.gt.f32.partialorder %v190, %v230
    %vm370 = vcmp.gt.f32.partialorder %v194, %v230
    %vm371 = vcmp.gt.f32.partialorder %v190, %v235
    %vm372 = vcmp.gt.f32.partialorder %v194, %v235
    %vm373 = vcmp.gt.f32.partialorder %v190, %v240
    %vm374 = vcmp.gt.f32.partialorder %v194, %v240
    %vm375 = vcmp.gt.f32.partialorder %v190, %v245
    %vm376 = vcmp.gt.f32.partialorder %v194, %v245
    %vm377 = vcmp.gt.f32.partialorder %v190, %v250
    %vm378 = vcmp.gt.f32.partialorder %v194, %v250
    %vm379 = vcmp.gt.f32.partialorder %v190, %v255
    %vm380 = vcmp.gt.f32.partialorder %v194, %v255
    %vm381 = vcmp.gt.f32.partialorder %v190, %v260
    %vm382 = vcmp.gt.f32.partialorder %v194, %v260
    %vm383 = vcmp.gt.f32.partialorder %v190, %v265
    %vm384 = vcmp.gt.f32.partialorder %v194, %v265
    %vm385 = vcmp.gt.f32.partialorder %v190, %v270
    %vm386 = vcmp.gt.f32.partialorder %v194, %v270
    %vm387 = vcmp.gt.f32.partialorder %v190, %v275
    %vm388 = vcmp.gt.f32.partialorder %v194, %v275
    %vm389 = vcmp.gt.f32.partialorder %v190, %v280
    %vm390 = vcmp.gt.f32.partialorder %v194, %v280
    %vm391 = vcmp.gt.f32.partialorder %v190, %v285
    %vm392 = vcmp.gt.f32.partialorder %v194, %v285
    %vm393 = vcmp.gt.f32.partialorder %v190, %v290
    %vm394 = vcmp.gt.f32.partialorder %v194, %v290
    %vm395 = vcmp.gt.f32.partialorder %v190, %v295
    %vm396 = vcmp.gt.f32.partialorder %v194, %v295
    %vm397 = vcmp.gt.f32.partialorder %v190, %v300
    %vm398 = vcmp.gt.f32.partialorder %v194, %v300
    %vm399 = vcmp.gt.f32.partialorder %v190, %v305
    %vm400 = vcmp.gt.f32.partialorder %v194, %v305
    %vm401 = vcmp.gt.f32.partialorder %v190, %v310
    %vm402 = vcmp.gt.f32.partialorder %v194, %v310
    %vm403 = vcmp.gt.f32.partialorder %v190, %v315
    %vm404 = vcmp.gt.f32.partialorder %v194, %v315
    %vm405 = vcmp.gt.f32.partialorder %v190, %v320
    %vm406 = vcmp.gt.f32.partialorder %v194, %v320
    %vm407 = vcmp.gt.f32.partialorder %v190, %v325
    %vm408 = vcmp.gt.f32.partialorder %v194, %v325
    %vm409 = vcmp.gt.f32.partialorder %v190, %v330
    %vm410 = vcmp.gt.f32.partialorder %v194, %v330
    %vm411 = vcmp.gt.f32.partialorder %v190, %v335
    %vm412 = vcmp.gt.f32.partialorder %v194, %v335
    %vm413 = vcmp.gt.f32.partialorder %v190, %v340
    %vm414 = vcmp.gt.f32.partialorder %v194, %v340
    %vm415 = vcmp.gt.f32.partialorder %v190, %v345
    %vm416 = vcmp.gt.f32.partialorder %v194, %v345
    %vm417 = vcmp.gt.f32.partialorder %v190, %v350
    %vm418 = vcmp.gt.f32.partialorder %v194, %v350
    %vm419 = vcmp.gt.f32.partialorder %v190, %v355
    %vm420 = vcmp.gt.f32.partialorder %v194, %v355
    %vm421 = vcmp.eq.f32.partialorder %v190, %v200
    %vm422 = vcmp.eq.f32.partialorder %v194, %v200
    %vm423 = vcmp.eq.f32.partialorder %v190, %v205
    %vm424 = vcmp.eq.f32.partialorder %v194, %v205
    %vm425 = vcmp.eq.f32.partialorder %v190, %v210
    %vm426 = vcmp.eq.f32.partialorder %v194, %v210
    %vm427 = vcmp.eq.f32.partialorder %v190, %v215
    %vm428 = vcmp.eq.f32.partialorder %v194, %v215
    %vm429 = vcmp.eq.f32.partialorder %v190, %v220
    %vm430 = vcmp.eq.f32.partialorder %v194, %v220
    %vm431 = vcmp.eq.f32.partialorder %v190, %v225
    %vm432 = vcmp.eq.f32.partialorder %v194, %v225
    %vm433 = vcmp.eq.f32.partialorder %v190, %v230
    %vm434 = vcmp.eq.f32.partialorder %v194, %v230
    %vm435 = vcmp.eq.f32.partialorder %v190, %v235
    %vm436 = vcmp.eq.f32.partialorder %v194, %v235
    %vm437 = vcmp.eq.f32.partialorder %v190, %v240
    %vm438 = vcmp.eq.f32.partialorder %v194, %v240
    %vm439 = vcmp.eq.f32.partialorder %v190, %v245
    %vm440 = vcmp.eq.f32.partialorder %v194, %v245
    %vm441 = vcmp.eq.f32.partialorder %v190, %v250
    %vm442 = vcmp.eq.f32.partialorder %v194, %v250
    %vm443 = vcmp.eq.f32.partialorder %v190, %v255
    %vm444 = vcmp.eq.f32.partialorder %v194, %v255
    %vm445 = vcmp.eq.f32.partialorder %v190, %v260
    %vm446 = vcmp.eq.f32.partialorder %v194, %v260
    %vm447 = vcmp.eq.f32.partialorder %v190, %v265
    %vm448 = vcmp.eq.f32.partialorder %v194, %v265
    %vm449 = vcmp.eq.f32.partialorder %v190, %v270
    %vm450 = vcmp.eq.f32.partialorder %v194, %v270
    %vm451 = vcmp.eq.f32.partialorder %v190, %v275
    %vm452 = vcmp.eq.f32.partialorder %v194, %v275
    %vm453 = vcmp.eq.f32.partialorder %v190, %v280
    %vm454 = vcmp.eq.f32.partialorder %v194, %v280
    %vm455 = vcmp.eq.f32.partialorder %v190, %v285
    %vm456 = vcmp.eq.f32.partialorder %v194, %v285
    %vm457 = vcmp.eq.f32.partialorder %v190, %v290
    %vm458 = vcmp.eq.f32.partialorder %v194, %v290
    %vm459 = vcmp.eq.f32.partialorder %v190, %v295
    %vm460 = vcmp.eq.f32.partialorder %v194, %v295
    %vm461 = vcmp.eq.f32.partialorder %v190, %v300
    %vm462 = vcmp.eq.f32.partialorder %v194, %v300
    %vm463 = vcmp.eq.f32.partialorder %v190, %v305
    %vm464 = vcmp.eq.f32.partialorder %v194, %v305
    %vm465 = vcmp.eq.f32.partialorder %v190, %v310
    %vm466 = vcmp.eq.f32.partialorder %v194, %v310
    %vm467 = vcmp.eq.f32.partialorder %v190, %v315
    %vm468 = vcmp.eq.f32.partialorder %v194, %v315
    %vm469 = vcmp.eq.f32.partialorder %v190, %v320
    %vm470 = vcmp.eq.f32.partialorder %v194, %v320
    %vm471 = vcmp.eq.f32.partialorder %v190, %v325
    %vm472 = vcmp.eq.f32.partialorder %v194, %v325
    %vm473 = vcmp.eq.f32.partialorder %v190, %v330
    %vm474 = vcmp.eq.f32.partialorder %v194, %v330
    %vm475 = vcmp.eq.f32.partialorder %v190, %v335
    %vm476 = vcmp.eq.f32.partialorder %v194, %v335
    %vm477 = vcmp.eq.f32.partialorder %v190, %v340
    %vm478 = vcmp.eq.f32.partialorder %v194, %v340
    %vm479 = vcmp.eq.f32.partialorder %v190, %v345
    %vm480 = vcmp.eq.f32.partialorder %v194, %v345
    %vm481 = vcmp.eq.f32.partialorder %v190, %v350
    %vm482 = vcmp.eq.f32.partialorder %v194, %v350
    %vm483 = vcmp.eq.f32.partialorder %v190, %v355
    %vm484 = vcmp.eq.f32.partialorder %v194, %v355
    %vm485 = vcmp.lt.s32.totalorder %v151, %v154
    %vm486 = vcmp.lt.s32.totalorder %v152, %v154
    %vm487 = vcmp.lt.s32.totalorder %v151, %v155
    %vm488 = vcmp.lt.s32.totalorder %v152, %v155
    %vm489 = vcmp.lt.s32.totalorder %v151, %v156
    %vm490 = vcmp.lt.s32.totalorder %v152, %v156
    %vm491 = vcmp.lt.s32.totalorder %v151, %v157
    %vm492 = vcmp.lt.s32.totalorder %v152, %v157
    %vm493 = vcmp.lt.s32.totalorder %v151, %v158
    %vm494 = vcmp.lt.s32.totalorder %v152, %v158
    %vm495 = vcmp.lt.s32.totalorder %v151, %v159
    %vm496 = vcmp.lt.s32.totalorder %v152, %v159
    %vm497 = vcmp.lt.s32.totalorder %v151, %v160
    %vm498 = vcmp.lt.s32.totalorder %v152, %v160
    %vm499 = vcmp.lt.s32.totalorder %v151, %v161
    %vm500 = vcmp.lt.s32.totalorder %v152, %v161
    %vm501 = vcmp.lt.s32.totalorder %v151, %v162
    %vm502 = vcmp.lt.s32.totalorder %v152, %v162
    %vm503 = vcmp.lt.s32.totalorder %v151, %v163
    %vm504 = vcmp.lt.s32.totalorder %v152, %v163
    %vm505 = vcmp.lt.s32.totalorder %v151, %v164
    %vm506 = vcmp.lt.s32.totalorder %v152, %v164
    %vm507 = vcmp.lt.s32.totalorder %v151, %v165
    %vm508 = vcmp.lt.s32.totalorder %v152, %v165
    %vm509 = vcmp.lt.s32.totalorder %v151, %v166
    %vm510 = vcmp.lt.s32.totalorder %v152, %v166
    %vm511 = vcmp.lt.s32.totalorder %v151, %v167
    %vm512 = vcmp.lt.s32.totalorder %v152, %v167
    %vm513 = vcmp.lt.s32.totalorder %v151, %v168
    %vm514 = vcmp.lt.s32.totalorder %v152, %v168
    %vm515 = vcmp.lt.s32.totalorder %v151, %v169
    %vm516 = vcmp.lt.s32.totalorder %v152, %v169
    %vm517 = vcmp.lt.s32.totalorder %v151, %v170
    %vm518 = vcmp.lt.s32.totalorder %v152, %v170
    %vm519 = vcmp.lt.s32.totalorder %v151, %v171
    %vm520 = vcmp.lt.s32.totalorder %v152, %v171
    %vm521 = vcmp.lt.s32.totalorder %v151, %v172
    %vm522 = vcmp.lt.s32.totalorder %v152, %v172
    %vm523 = vcmp.lt.s32.totalorder %v151, %v173
    %vm524 = vcmp.lt.s32.totalorder %v152, %v173
    %vm525 = vcmp.lt.s32.totalorder %v151, %v174
    %vm526 = vcmp.lt.s32.totalorder %v152, %v174
    %vm527 = vcmp.lt.s32.totalorder %v151, %v175
    %vm528 = vcmp.lt.s32.totalorder %v152, %v175
    %vm529 = vcmp.lt.s32.totalorder %v151, %v176
    %vm530 = vcmp.lt.s32.totalorder %v152, %v176
    %vm531 = vcmp.lt.s32.totalorder %v151, %v177
    %vm532 = vcmp.lt.s32.totalorder %v152, %v177
    %vm533 = vcmp.lt.s32.totalorder %v151, %v178
    %vm534 = vcmp.lt.s32.totalorder %v152, %v178
    %vm535 = vcmp.lt.s32.totalorder %v151, %v179
    %vm536 = vcmp.lt.s32.totalorder %v152, %v179
    %vm537 = vcmp.lt.s32.totalorder %v151, %v180
    %vm538 = vcmp.lt.s32.totalorder %v152, %v180
    %vm539 = vcmp.lt.s32.totalorder %v151, %v181
    %vm540 = vcmp.lt.s32.totalorder %v152, %v181
    %vm541 = vcmp.lt.s32.totalorder %v151, %v182
    %vm542 = vcmp.lt.s32.totalorder %v152, %v182
    %vm543 = vcmp.lt.s32.totalorder %v151, %v183
    %vm544 = vcmp.lt.s32.totalorder %v152, %v183
    %vm545 = vcmp.lt.s32.totalorder %v151, %v184
    %vm546 = vcmp.lt.s32.totalorder %v152, %v184
    %vm547 = vcmp.lt.s32.totalorder %v151, %v185
    %vm548 = vcmp.lt.s32.totalorder %v152, %v185
    %vm549 = vmand %vm421, %vm485
    %vm550 = vmand %vm422, %vm486
    %vm551 = vmand %vm423, %vm487
    %vm552 = vmand %vm424, %vm488
    %vm553 = vmand %vm425, %vm489
    %vm554 = vmand %vm426, %vm490
    %vm555 = vmand %vm427, %vm491
    %vm556 = vmand %vm428, %vm492
    %vm557 = vmand %vm429, %vm493
    %vm558 = vmand %vm430, %vm494
    %vm559 = vmand %vm431, %vm495
    %vm560 = vmand %vm432, %vm496
    %vm561 = vmand %vm433, %vm497
    %vm562 = vmand %vm434, %vm498
    %vm563 = vmand %vm435, %vm499
    %vm564 = vmand %vm436, %vm500
    %vm565 = vmand %vm437, %vm501
    %vm566 = vmand %vm438, %vm502
    %vm567 = vmand %vm439, %vm503
    %vm568 = vmand %vm440, %vm504
    %vm569 = vmand %vm441, %vm505
    %vm570 = vmand %vm442, %vm506
    %vm571 = vmand %vm443, %vm507
    %vm572 = vmand %vm444, %vm508
    %vm573 = vmand %vm445, %vm509
    %vm574 = vmand %vm446, %vm510
    %vm575 = vmand %vm447, %vm511
    %vm576 = vmand %vm448, %vm512
    %vm577 = vmand %vm449, %vm513
    %vm578 = vmand %vm450, %vm514
    %vm579 = vmand %vm451, %vm515
    %vm580 = vmand %vm452, %vm516
    %vm581 = vmand %vm453, %vm517
    %vm582 = vmand %vm454, %vm518
    %vm583 = vmand %vm455, %vm519
    %vm584 = vmand %vm456, %vm520
    %vm585 = vmand %vm457, %vm521
    %vm586 = vmand %vm458, %vm522
    %vm587 = vmand %vm459, %vm523
    %vm588 = vmand %vm460, %vm524
    %vm589 = vmand %vm461, %vm525
    %vm590 = vmand %vm462, %vm526
    %vm591 = vmand %vm463, %vm527
    %vm592 = vmand %vm464, %vm528
    %vm593 = vmand %vm465, %vm529
    %vm594 = vmand %vm466, %vm530
    %vm595 = vmand %vm467, %vm531
    %vm596 = vmand %vm468, %vm532
    %vm597 = vmand %vm469, %vm533
    %vm598 = vmand %vm470, %vm534
    %vm599 = vmand %vm471, %vm535
    %vm600 = vmand %vm472, %vm536
    %vm601 = vmand %vm473, %vm537
    %vm602 = vmand %vm474, %vm538
    %vm603 = vmand %vm475, %vm539
    %vm604 = vmand %vm476, %vm540
    %vm605 = vmand %vm477, %vm541
    %vm606 = vmand %vm478, %vm542
    %vm607 = vmand %vm479, %vm543
    %vm608 = vmand %vm480, %vm544
    %vm609 = vmand %vm481, %vm545
    %vm610 = vmand %vm482, %vm546
    %vm611 = vmand %vm483, %vm547
    %vm612 = vmand %vm484, %vm548
    %vm613 = vmor %vm357, %vm549
    %vm614 = vmor %vm358, %vm550
    %vm615 = vmor %vm359, %vm551
    %vm616 = vmor %vm360, %vm552
    %vm617 = vmor %vm361, %vm553
    %vm618 = vmor %vm362, %vm554
    %vm619 = vmor %vm363, %vm555
    %vm620 = vmor %vm364, %vm556
    %vm621 = vmor %vm365, %vm557
    %vm622 = vmor %vm366, %vm558
    %vm623 = vmor %vm367, %vm559
    %vm624 = vmor %vm368, %vm560
    %vm625 = vmor %vm369, %vm561
    %vm626 = vmor %vm370, %vm562
    %vm627 = vmor %vm371, %vm563
    %vm628 = vmor %vm372, %vm564
    %vm629 = vmor %vm373, %vm565
    %vm630 = vmor %vm374, %vm566
    %vm631 = vmor %vm375, %vm567
    %vm632 = vmor %vm376, %vm568
    %vm633 = vmor %vm377, %vm569
    %vm634 = vmor %vm378, %vm570
    %vm635 = vmor %vm379, %vm571
    %vm636 = vmor %vm380, %vm572
    %vm637 = vmor %vm381, %vm573
    %vm638 = vmor %vm382, %vm574
    %vm639 = vmor %vm383, %vm575
    %vm640 = vmor %vm384, %vm576
    %vm641 = vmor %vm385, %vm577
    %vm642 = vmor %vm386, %vm578
    %vm643 = vmor %vm387, %vm579
    %vm644 = vmor %vm388, %vm580
    %vm645 = vmor %vm389, %vm581
    %vm646 = vmor %vm390, %vm582
    %vm647 = vmor %vm391, %vm583
    %vm648 = vmor %vm392, %vm584
    %vm649 = vmor %vm393, %vm585
    %vm650 = vmor %vm394, %vm586
    %vm651 = vmor %vm395, %vm587
    %vm652 = vmor %vm396, %vm588
    %vm653 = vmor %vm397, %vm589
    %vm654 = vmor %vm398, %vm590
    %vm655 = vmor %vm399, %vm591
    %vm656 = vmor %vm400, %vm592
    %vm657 = vmor %vm401, %vm593
    %vm658 = vmor %vm402, %vm594
    %vm659 = vmor %vm403, %vm595
    %vm660 = vmor %vm404, %vm596
    %vm661 = vmor %vm405, %vm597
    %vm662 = vmor %vm406, %vm598
    %vm663 = vmor %vm407, %vm599
    %vm664 = vmor %vm408, %vm600
    %vm665 = vmor %vm409, %vm601
    %vm666 = vmor %vm410, %vm602
    %vm667 = vmor %vm411, %vm603
    %vm668 = vmor %vm412, %vm604
    %vm669 = vmor %vm413, %vm605
    %vm670 = vmor %vm414, %vm606
    %vm671 = vmor %vm415, %vm607
    %vm672 = vmor %vm416, %vm608
    %vm673 = vmor %vm417, %vm609
    %vm674 = vmor %vm418, %vm610
    %vm675 = vmor %vm419, %vm611
    %vm676 = vmor %vm420, %vm612
    %v677 = vsel %vm613, 1, 0
    %v678 = vsel %vm614, 1, 0
    %v679 = vsel %vm615, 1, 0
    %v680 = vsel %vm616, 1, 0
    %v681 = vsel %vm617, 1, 0
    %v682 = vsel %vm618, 1, 0
    %v683 = vsel %vm619, 1, 0
    %v684 = vsel %vm620, 1, 0
    %v685 = vsel %vm621, 1, 0
    %v686 = vsel %vm622, 1, 0
    %v687 = vsel %vm623, 1, 0
    %v688 = vsel %vm624, 1, 0
    %v689 = vsel %vm625, 1, 0
    %v690 = vsel %vm626, 1, 0
    %v691 = vsel %vm627, 1, 0
    %v692 = vsel %vm628, 1, 0
    %v693 = vsel %vm629, 1, 0
    %v694 = vsel %vm630, 1, 0
    %v695 = vsel %vm631, 1, 0
    %v696 = vsel %vm632, 1, 0
    %v697 = vsel %vm633, 1, 0
    %v698 = vsel %vm634, 1, 0
    %v699 = vsel %vm635, 1, 0
    %v700 = vsel %vm636, 1, 0
    %v701 = vsel %vm637, 1, 0
    %v702 = vsel %vm638, 1, 0
    %v703 = vsel %vm639, 1, 0
    %v704 = vsel %vm640, 1, 0
    %v705 = vsel %vm641, 1, 0
    %v706 = vsel %vm642, 1, 0
    %v707 = vsel %vm643, 1, 0
    %v708 = vsel %vm644, 1, 0
    %v709 = vsel %vm645, 1, 0
    %v710 = vsel %vm646, 1, 0
    %v711 = vsel %vm647, 1, 0
    %v712 = vsel %vm648, 1, 0
    %v713 = vsel %vm649, 1, 0
    %v714 = vsel %vm650, 1, 0
    %v715 = vsel %vm651, 1, 0
    %v716 = vsel %vm652, 1, 0
    %v717 = vsel %vm653, 1, 0
    %v718 = vsel %vm654, 1, 0
    %v719 = vsel %vm655, 1, 0
    %v720 = vsel %vm656, 1, 0
    %v721 = vsel %vm657, 1, 0
    %v722 = vsel %vm658, 1, 0
    %v723 = vsel %vm659, 1, 0
    %v724 = vsel %vm660, 1, 0
    %v725 = vsel %vm661, 1, 0
    %v726 = vsel %vm662, 1, 0
    %v727 = vsel %vm663, 1, 0
    %v728 = vsel %vm664, 1, 0
    %v729 = vsel %vm665, 1, 0
    %v730 = vsel %vm666, 1, 0
    %v731 = vsel %vm667, 1, 0
    %v732 = vsel %vm668, 1, 0
    %v733 = vsel %vm669, 1, 0
    %v734 = vsel %vm670, 1, 0
    %v735 = vsel %vm671, 1, 0
    %v736 = vsel %vm672, 1, 0
    %v737 = vsel %vm673, 1, 0
    %v738 = vsel %vm674, 1, 0
    %v739 = vsel %vm675, 1, 0
    %v740 = vsel %vm676, 1, 0
    %v741 = vcvt.s32.f32 %v677
    %v742 = vcvt.s32.f32 %v678
    %v743 = vcvt.s32.f32 %v679
    %v744 = vcvt.s32.f32 %v680
    %v745 = vcvt.s32.f32 %v681
    %v746 = vcvt.s32.f32 %v682
    %v747 = vcvt.s32.f32 %v683
    %v748 = vcvt.s32.f32 %v684
    %v749 = vcvt.s32.f32 %v685
    %v750 = vcvt.s32.f32 %v686
    %v751 = vcvt.s32.f32 %v687
    %v752 = vcvt.s32.f32 %v688
    %v753 = vcvt.s32.f32 %v689
    %v754 = vcvt.s32.f32 %v690
    %v755 = vcvt.s32.f32 %v691
    %v756 = vcvt.s32.f32 %v692
    %v757 = vcvt.s32.f32 %v693
    %v758 = vcvt.s32.f32 %v694
    %v759 = vcvt.s32.f32 %v695
    %v760 = vcvt.s32.f32 %v696
    %v761 = vcvt.s32.f32 %v697
    %v762 = vcvt.s32.f32 %v698
    %v763 = vcvt.s32.f32 %v699
    %v764 = vcvt.s32.f32 %v700
    %v765 = vcvt.s32.f32 %v701
    %v766 = vcvt.s32.f32 %v702
    %v767 = vcvt.s32.f32 %v703
    %v768 = vcvt.s32.f32 %v704
    %v769 = vcvt.s32.f32 %v705
    %v770 = vcvt.s32.f32 %v706
    %v771 = vcvt.s32.f32 %v707
    %v772 = vcvt.s32.f32 %v708
    %v773 = vcvt.s32.f32 %v709
    %v774 = vcvt.s32.f32 %v710
    %v775 = vcvt.s32.f32 %v711
    %v776 = vcvt.s32.f32 %v712
    %v777 = vcvt.s32.f32 %v713
    %v778 = vcvt.s32.f32 %v714
    %v779 = vcvt.s32.f32 %v715
    %v780 = vcvt.s32.f32 %v716
    %v781 = vcvt.s32.f32 %v717
    %v782 = vcvt.s32.f32 %v718
    %v783 = vcvt.s32.f32 %v719
    %v784 = vcvt.s32.f32 %v720
    %v785 = vcvt.s32.f32 %v721
    %v786 = vcvt.s32.f32 %v722
    %v787 = vcvt.s32.f32 %v723
    %v788 = vcvt.s32.f32 %v724
    %v789 = vcvt.s32.f32 %v725
    %v790 = vcvt.s32.f32 %v726
    %v791 = vcvt.s32.f32 %v727
    %v792 = vcvt.s32.f32 %v728
    %v793 = vcvt.s32.f32 %v729
    %v794 = vcvt.s32.f32 %v730
    %v795 = vcvt.s32.f32 %v731
    %v796 = vcvt.s32.f32 %v732
    %v797 = vcvt.s32.f32 %v733
    %v798 = vcvt.s32.f32 %v734
    %v799 = vcvt.s32.f32 %v735
    %v800 = vcvt.s32.f32 %v736
    %v801 = vcvt.s32.f32 %v737
    %v802 = vcvt.s32.f32 %v738
    %v803 = vcvt.s32.f32 %v739
    %v804 = vcvt.s32.f32 %v740
    %v805 = vadd.f32 %v741, %v742
    %806 = vadd.xlane.f32.xlu0 %v805
    %v807 = vpop.xlane.xlu0 %806
    %v808 = vadd.f32 %v743, %v744
    %809 = vadd.xlane.f32.xlu0 %v808
    %v810 = vpop.xlane.xlu0 %809
    %v811 = vadd.f32 %v745, %v746
    %812 = vadd.xlane.f32.xlu0 %v811
    %v813 = vpop.xlane.xlu0 %812
    %v814 = vadd.f32 %v747, %v748
    %815 = vadd.xlane.f32.xlu0 %v814
    %v816 = vpop.xlane.xlu0 %815
    %v817 = vadd.f32 %v749, %v750
    %818 = vadd.xlane.f32.xlu0 %v817
    %v819 = vpop.xlane.xlu0 %818
    %v820 = vadd.f32 %v751, %v752
    %821 = vadd.xlane.f32.xlu0 %v820
    %v822 = vpop.xlane.xlu0 %821
    %v823 = vadd.f32 %v753, %v754
    %824 = vadd.xlane.f32.xlu0 %v823
    %v825 = vpop.xlane.xlu0 %824
    %v826 = vadd.f32 %v755, %v756
    %827 = vadd.xlane.f32.xlu0 %v826
    %v828 = vpop.xlane.xlu0 %827
    %v829 = vadd.f32 %v757, %v758
    %830 = vadd.xlane.f32.xlu0 %v829
    %v831 = vpop.xlane.xlu0 %830
    %v832 = vadd.f32 %v759, %v760
    %833 = vadd.xlane.f32.xlu0 %v832
    %v834 = vpop.xlane.xlu0 %833
    %v835 = vadd.f32 %v761, %v762
    %836 = vadd.xlane.f32.xlu0 %v835
    %v837 = vpop.xlane.xlu0 %836
    %v838 = vadd.f32 %v763, %v764
    %839 = vadd.xlane.f32.xlu0 %v838
    %v840 = vpop.xlane.xlu0 %839
    %v841 = vadd.f32 %v765, %v766
    %842 = vadd.xlane.f32.xlu0 %v841
    %v843 = vpop.xlane.xlu0 %842
    %v844 = vadd.f32 %v767, %v768
    %845 = vadd.xlane.f32.xlu0 %v844
    %v846 = vpop.xlane.xlu0 %845
    %v847 = vadd.f32 %v769, %v770
    %848 = vadd.xlane.f32.xlu0 %v847
    %v849 = vpop.xlane.xlu0 %848
    %v850 = vadd.f32 %v771, %v772
    %851 = vadd.xlane.f32.xlu0 %v850
    %v852 = vpop.xlane.xlu0 %851
    %v853 = vadd.f32 %v773, %v774
    %854 = vadd.xlane.f32.xlu0 %v853
    %v855 = vpop.xlane.xlu0 %854
    %v856 = vadd.f32 %v775, %v776
    %857 = vadd.xlane.f32.xlu0 %v856
    %v858 = vpop.xlane.xlu0 %857
    %v859 = vadd.f32 %v777, %v778
    %860 = vadd.xlane.f32.xlu0 %v859
    %v861 = vpop.xlane.xlu0 %860
    %v862 = vadd.f32 %v779, %v780
    %863 = vadd.xlane.f32.xlu0 %v862
    %v864 = vpop.xlane.xlu0 %863
    %v865 = vadd.f32 %v781, %v782
    %866 = vadd.xlane.f32.xlu0 %v865
    %v867 = vpop.xlane.xlu0 %866
    %v868 = vadd.f32 %v783, %v784
    %869 = vadd.xlane.f32.xlu0 %v868
    %v870 = vpop.xlane.xlu0 %869
    %v871 = vadd.f32 %v785, %v786
    %872 = vadd.xlane.f32.xlu0 %v871
    %v873 = vpop.xlane.xlu0 %872
    %v874 = vadd.f32 %v787, %v788
    %875 = vadd.xlane.f32.xlu0 %v874
    %v876 = vpop.xlane.xlu0 %875
    %v877 = vadd.f32 %v789, %v790
    %878 = vadd.xlane.f32.xlu0 %v877
    %v879 = vpop.xlane.xlu0 %878
    %v880 = vadd.f32 %v791, %v792
    %881 = vadd.xlane.f32.xlu0 %v880
    %v882 = vpop.xlane.xlu0 %881
    %v883 = vadd.f32 %v793, %v794
    %884 = vadd.xlane.f32.xlu0 %v883
    %v885 = vpop.xlane.xlu0 %884
    %v886 = vadd.f32 %v795, %v796
    %887 = vadd.xlane.f32.xlu0 %v886
    %v888 = vpop.xlane.xlu0 %887
    %v889 = vadd.f32 %v797, %v798
    %890 = vadd.xlane.f32.xlu0 %v889
    %v891 = vpop.xlane.xlu0 %890
    %v892 = vadd.f32 %v799, %v800
    %893 = vadd.xlane.f32.xlu0 %v892
    %v894 = vpop.xlane.xlu0 %893
    %v895 = vadd.f32 %v801, %v802
    %896 = vadd.xlane.f32.xlu0 %v895
    %v897 = vpop.xlane.xlu0 %896
    %v898 = vadd.f32 %v803, %v804
    %899 = vadd.xlane.f32.xlu0 %v898
    %v900 = vpop.xlane.xlu0 %899
    %v901 = vcvt.f32.s32.to.zero.pseudo %v807
    %v902 = vcvt.f32.s32.to.zero.pseudo %v810
    %v903 = vcvt.f32.s32.to.zero.pseudo %v813
    %v904 = vcvt.f32.s32.to.zero.pseudo %v816
    %v905 = vcvt.f32.s32.to.zero.pseudo %v819
    %v906 = vcvt.f32.s32.to.zero.pseudo %v822
    %v907 = vcvt.f32.s32.to.zero.pseudo %v825
    %v908 = vcvt.f32.s32.to.zero.pseudo %v828
    %v909 = vcvt.f32.s32.to.zero.pseudo %v831
    %v910 = vcvt.f32.s32.to.zero.pseudo %v834
    %v911 = vcvt.f32.s32.to.zero.pseudo %v837
    %v912 = vcvt.f32.s32.to.zero.pseudo %v840
    %v913 = vcvt.f32.s32.to.zero.pseudo %v843
    %v914 = vcvt.f32.s32.to.zero.pseudo %v846
    %v915 = vcvt.f32.s32.to.zero.pseudo %v849
    %v916 = vcvt.f32.s32.to.zero.pseudo %v852
    %v917 = vcvt.f32.s32.to.zero.pseudo %v855
    %v918 = vcvt.f32.s32.to.zero.pseudo %v858
    %v919 = vcvt.f32.s32.to.zero.pseudo %v861
    %v920 = vcvt.f32.s32.to.zero.pseudo %v864
    %v921 = vcvt.f32.s32.to.zero.pseudo %v867
    %v922 = vcvt.f32.s32.to.zero.pseudo %v870
    %v923 = vcvt.f32.s32.to.zero.pseudo %v873
    %v924 = vcvt.f32.s32.to.zero.pseudo %v876
    %v925 = vcvt.f32.s32.to.zero.pseudo %v879
    %v926 = vcvt.f32.s32.to.zero.pseudo %v882
    %v927 = vcvt.f32.s32.to.zero.pseudo %v885
    %v928 = vcvt.f32.s32.to.zero.pseudo %v888
    %v929 = vcvt.f32.s32.to.zero.pseudo %v891
    %v930 = vcvt.f32.s32.to.zero.pseudo %v894
    %v931 = vcvt.f32.s32.to.zero.pseudo %v897
    %v932 = vcvt.f32.s32.to.zero.pseudo %v900
    %v933 = vcvt.s32.f32 %v154
    %v934 = vcvt.s32.f32 %v155
    %v935 = vcvt.s32.f32 %v156
    %v936 = vcvt.s32.f32 %v157
    %v937 = vcvt.s32.f32 %v158
    %v938 = vcvt.s32.f32 %v159
    %v939 = vcvt.s32.f32 %v160
    %v940 = vcvt.s32.f32 %v161
    %v941 = vcvt.s32.f32 %v162
    %v942 = vcvt.s32.f32 %v163
    %v943 = vcvt.s32.f32 %v164
    %v944 = vcvt.s32.f32 %v165
    %v945 = vcvt.s32.f32 %v166
    %v946 = vcvt.s32.f32 %v167
    %v947 = vcvt.s32.f32 %v168
    %v948 = vcvt.s32.f32 %v169
    %v949 = vcvt.s32.f32 %v170
    %v950 = vcvt.s32.f32 %v171
    %v951 = vcvt.s32.f32 %v172
    %v952 = vcvt.s32.f32 %v173
    %v953 = vcvt.s32.f32 %v174
    %v954 = vcvt.s32.f32 %v175
    %v955 = vcvt.s32.f32 %v176
    %v956 = vcvt.s32.f32 %v177
    %v957 = vcvt.s32.f32 %v178
    %v958 = vcvt.s32.f32 %v179
    %v959 = vcvt.s32.f32 %v180
    %v960 = vcvt.s32.f32 %v181
    %v961 = vcvt.s32.f32 %v182
    %v962 = vcvt.s32.f32 %v183
    %v963 = vcvt.s32.f32 %v184
    %v964 = vcvt.s32.f32 %v185
    %vm965 = vcmp.eq.s32.totalorder %v901, %v151
    %vm966 = vcmp.eq.s32.totalorder %v902, %v151
    %vm967 = vcmp.eq.s32.totalorder %v903, %v151
    %vm968 = vcmp.eq.s32.totalorder %v904, %v151
    %vm969 = vcmp.eq.s32.totalorder %v905, %v151
    %vm970 = vcmp.eq.s32.totalorder %v906, %v151
    %vm971 = vcmp.eq.s32.totalorder %v907, %v151
    %vm972 = vcmp.eq.s32.totalorder %v908, %v151
    %vm973 = vcmp.eq.s32.totalorder %v909, %v151
    %vm974 = vcmp.eq.s32.totalorder %v910, %v151
    %vm975 = vcmp.eq.s32.totalorder %v911, %v151
    %vm976 = vcmp.eq.s32.totalorder %v912, %v151
    %vm977 = vcmp.eq.s32.totalorder %v913, %v151
    %vm978 = vcmp.eq.s32.totalorder %v914, %v151
    %vm979 = vcmp.eq.s32.totalorder %v915, %v151
    %vm980 = vcmp.eq.s32.totalorder %v916, %v151
    %vm981 = vcmp.eq.s32.totalorder %v917, %v151
    %vm982 = vcmp.eq.s32.totalorder %v918, %v151
    %vm983 = vcmp.eq.s32.totalorder %v919, %v151
    %vm984 = vcmp.eq.s32.totalorder %v920, %v151
    %vm985 = vcmp.eq.s32.totalorder %v921, %v151
    %vm986 = vcmp.eq.s32.totalorder %v922, %v151
    %vm987 = vcmp.eq.s32.totalorder %v923, %v151
    %vm988 = vcmp.eq.s32.totalorder %v924, %v151
    %vm989 = vcmp.eq.s32.totalorder %v925, %v151
    %vm990 = vcmp.eq.s32.totalorder %v926, %v151
    %vm991 = vcmp.eq.s32.totalorder %v927, %v151
    %vm992 = vcmp.eq.s32.totalorder %v928, %v151
    %vm993 = vcmp.eq.s32.totalorder %v929, %v151
    %vm994 = vcmp.eq.s32.totalorder %v930, %v151
    %vm995 = vcmp.eq.s32.totalorder %v931, %v151
    %vm996 = vcmp.eq.s32.totalorder %v932, %v151
    %v997 = vsel %vm965, %v933, 0.0
    %v998 = vsel %vm966, %v934, 0.0
    %v999 = vsel %vm967, %v935, 0.0
    %v1000 = vsel %vm968, %v936, 0.0
    %v1001 = vsel %vm969, %v937, 0.0
    %v1002 = vsel %vm970, %v938, 0.0
    %v1003 = vsel %vm971, %v939, 0.0
    %v1004 = vsel %vm972, %v940, 0.0
    %v1005 = vsel %vm973, %v941, 0.0
    %v1006 = vsel %vm974, %v942, 0.0
    %v1007 = vsel %vm975, %v943, 0.0
    %v1008 = vsel %vm976, %v944, 0.0
    %v1009 = vsel %vm977, %v945, 0.0
    %v1010 = vsel %vm978, %v946, 0.0
    %v1011 = vsel %vm979, %v947, 0.0
    %v1012 = vsel %vm980, %v948, 0.0
    %v1013 = vsel %vm981, %v949, 0.0
    %v1014 = vsel %vm982, %v950, 0.0
    %v1015 = vsel %vm983, %v951, 0.0
    %v1016 = vsel %vm984, %v952, 0.0
    %v1017 = vsel %vm985, %v953, 0.0
    %v1018 = vsel %vm986, %v954, 0.0
    %v1019 = vsel %vm987, %v955, 0.0
    %v1020 = vsel %vm988, %v956, 0.0
    %v1021 = vsel %vm989, %v957, 0.0
    %v1022 = vsel %vm990, %v958, 0.0
    %v1023 = vsel %vm991, %v959, 0.0
    %v1024 = vsel %vm992, %v960, 0.0
    %v1025 = vsel %vm993, %v961, 0.0
    %v1026 = vsel %vm994, %v962, 0.0
    %v1027 = vsel %vm995, %v963, 0.0
    %v1028 = vsel %vm996, %v964, 0.0
    %v1029 = vadd.f32 %v997, %v998
    %v1030 = vadd.f32 %v1029, %v999
    %v1031 = vadd.f32 %v1030, %v1000
    %v1032 = vadd.f32 %v1031, %v1001
    %v1033 = vadd.f32 %v1032, %v1002
    %v1034 = vadd.f32 %v1033, %v1003
    %v1035 = vadd.f32 %v1034, %v1004
    %v1036 = vadd.f32 %v1035, %v1005
    %v1037 = vadd.f32 %v1036, %v1006
    %v1038 = vadd.f32 %v1037, %v1007
    %v1039 = vadd.f32 %v1038, %v1008
    %v1040 = vadd.f32 %v1039, %v1009
    %v1041 = vadd.f32 %v1040, %v1010
    %v1042 = vadd.f32 %v1041, %v1011
    %v1043 = vadd.f32 %v1042, %v1012
    %v1044 = vadd.f32 %v1043, %v1013
    %v1045 = vadd.f32 %v1044, %v1014
    %v1046 = vadd.f32 %v1045, %v1015
    %v1047 = vadd.f32 %v1046, %v1016
    %v1048 = vadd.f32 %v1047, %v1017
    %v1049 = vadd.f32 %v1048, %v1018
    %v1050 = vadd.f32 %v1049, %v1019
    %v1051 = vadd.f32 %v1050, %v1020
    %v1052 = vadd.f32 %v1051, %v1021
    %v1053 = vadd.f32 %v1052, %v1022
    %v1054 = vadd.f32 %v1053, %v1023
    %v1055 = vadd.f32 %v1054, %v1024
    %v1056 = vadd.f32 %v1055, %v1025
    %v1057 = vadd.f32 %v1056, %v1026
    %v1058 = vadd.f32 %v1057, %v1027
    %v1059 = vadd.f32 %v1058, %v1028
    %v1060 = vrot.slane %v1059, 4
    %v1061 = vadd.f32 %v1059, %v1060
    %v1062 = vrot.slane %v1061, 2
    %v1063 = vadd.f32 %v1061, %v1062
    %v1064 = vrot.slane %v1063, 1
    %v1065 = vadd.f32 %v1063, %v1064
    %v1066 = vcvt.f32.s32.to.zero.pseudo %v1065
    %1067 = vst [vmem:[#allocation2] sm:$0x1] %v1066
    // Predicated region
    $region18: #{tpu_custom_call.1} parent=1 // pred_check
      _
    $region19: #{tpu_custom_call.1} parent=1 // pred_check_branch
      %1069 = sbr.rel (0) target = $region21
    $region20: #{tpu_custom_call.1} parent=1 // pred_region
      %s1071 = ssub.s32 16, 16
      %1072 = vsyncadd [#allocation3], %s1071
      %s1074 = sshll.u32 [#allocation2], 4
      %s1075 = int_to_ptr.vmem [resolvable:$true] %s1074
      %1077 = dma.vmem_to_hbm [thread:$0]  %s1075, 16, %s4, [#allocation3]
    $region21: #{tpu_custom_call.1} parent=1 // pred_fallthru
      _
    // Predicated region
    $region22: #{tpu_custom_call.1} parent=1 // pred_check
      _
    $region23: #{tpu_custom_call.1} parent=1 // pred_check_branch
      %1079 = sbr.rel (0) target = $region25
    $region24: #{tpu_custom_call.1} parent=1 // pred_region
      %1080 = dma.done [#allocation3], 16
    $region25: #{tpu_custom_call.1} parent=1 // pred_fallthru
      _
    %1081 = vsyncpa [#allocation3], 1

</llo_original>
